<compile_context>
chip_gen: v7x
topology: tpu7x:2x2x1
jax: 0.10.0
libtpu: 0.0.40
codegen_flags: <defaults>
</compile_context>

<pallas_src>
import functools

import jax
import jax.numpy as jnp
from jax.experimental import pallas as pl
from jax.experimental.pallas import tpu as pltpu

BN_EPS = 1e-5
_LANE = 128  # last-dim tiling unit


def _round_up(x, m):
    return (x + m - 1) // m * m


def _vmem_limit(need_bytes):
    # Headroom over the analytic buffer budget; never below the default scoped limit,
    # never above 128 MiB (v5e/v6e physical). Per-tile sizing keeps actual use well
    # under v7x's 64 MiB/TC for these shapes.
    return int(min(max(int(need_bytes * 1.5) + (2 << 20), 32 << 20), 128 << 20))


def _pick_block_n(cout_p):
    # Fat tiles first (fewer grid steps, better DMA amortization on v5e), but keep >=2
    # grid steps when possible so v7x megacore can shard the parallel Cout axis.
    for bn in (512, 256, 128):
        if cout_p % bn == 0 and cout_p // bn >= 2:
            return bn
    for bn in (512, 256, 128):
        if cout_p % bn == 0:
            return bn
    return _LANE


def _pick_k_block(cin, k_block):
    if k_block is not None:
        if cin % k_block == 0 and cin // k_block >= 2:
            return k_block
        return None
    # Auto: only K-tile when Cin is large enough that the single-shot resident slabs
    # would pressure VMEM; small Cin stays single-shot (one MXU pass, no accumulator).
    if cin >= 2048:
        for tk in (512, 256, 128):
            if cin % tk == 0:
                return tk
    return None


def _bn_tanh_epilogue(y, gb, batch, out_dtype):
    """y: (B, TN) f32 pre-BN activations (VMEM-resident); gb: (2, TN) gamma/beta."""
    inv_b = jnp.float32(1.0 / batch)
    mean = jnp.sum(y, axis=0, keepdims=True) * inv_b          # (1, TN)
    d = y - mean
    var = jnp.sum(d * d, axis=0, keepdims=True) * inv_b       # biased (torch train mode)
    gamma = gb[0:1, :].astype(jnp.float32)
    beta = gb[1:2, :].astype(jnp.float32)
    z = d * (jax.lax.rsqrt(var + BN_EPS) * gamma) + beta
    return (1.0 + jnp.tanh(z)).astype(out_dtype)


def _s_block_kernel(x_ref, wt_ref, gb_ref, o_ref, *, batch):
    # x_ref : (B, Cin)      full batch, resident, single-buffered
    # wt_ref: (Cin, TN)     pre-transposed weight tile (native MXU layout)
    # gb_ref: (2, TN)       row 0 = gamma, row 1 = beta
    y = jnp.dot(x_ref[...], wt_ref[...], preferred_element_type=jnp.float32)
    o_ref[...] = _bn_tanh_epilogue(y, gb_ref[...], batch, o_ref.dtype)


def _s_block_kernel_ktiled(x_ref, wt_ref, gb_ref, o_ref, acc_ref, *, batch):
    # Grid = (Cout tiles, K tiles); K innermost / "arbitrary". acc_ref: (B, TN) f32.
    k = pl.program_id(1)

    @pl.when(k == 0)
    def _():
        acc_ref[...] = jnp.zeros_like(acc_ref)

    acc_ref[...] += jnp.dot(x_ref[...], wt_ref[...], preferred_element_type=jnp.float32)

    @pl.when(k == pl.num_programs(1) - 1)
    def _():
        o_ref[...] = _bn_tanh_epilogue(acc_ref[...], gb_ref[...], batch, o_ref.dtype)


def prepare_s_block_params(w, gamma, beta, *, compute_dtype=None):
    """One-time (init) parameter prep - NOT in the per-call hot path.

    w: (C_out, C_in) PyTorch Linear layout. Returns the (C_in, C_out_padded) transposed
    weight in the MXU compute dtype plus a folded (2, C_out_padded) gamma/beta slab.
    """
    cout, cin = w.shape
    cout_p = _round_up(cout, _LANE)
    wdt = jnp.dtype(compute_dtype) if compute_dtype is not None else w.dtype
    wt_p = jnp.zeros((cin, cout_p), wdt).at[:, :cout].set(jnp.transpose(w).astype(wdt))
    gb_p = jnp.zeros((2, cout_p), jnp.float32)
    gb_p = gb_p.at[0, :cout].set(gamma.astype(jnp.float32))
    gb_p = gb_p.at[1, :cout].set(beta.astype(jnp.float32))
    return {"wt": wt_p, "gb": gb_p, "out_features": cout}


def s_block_apply(x, params, *, block_n=None, k_block=None):
    """Hot path. x: (B, C_in) unpadded; params from prepare_s_block_params."""
    wt, gb, cout = params["wt"], params["gb"], params["out_features"]
    B, cin = x.shape
    assert wt.shape[0] == cin
    cout_p = wt.shape[1]
    out_dtype = x.dtype
    if x.dtype != wt.dtype:
        x = x.astype(wt.dtype)  # bf16 into the MXU when params were prepared as bf16

    bn = block_n if block_n is not None else _pick_block_n(cout_p)
    tk = _pick_k_block(cin, k_block)

    itm = jnp.dtype(wt.dtype).itemsize
    oitm = jnp.dtype(out_dtype).itemsize
    cost = pl.CostEstimate(
        flops=2 * B * cin * cout_p,
        transcendentals=B * cout_p,  # tanh
        bytes_accessed=B * cin * itm + cin * cout_p * itm + B * cout_p * oitm,
    )

    if tk is None:
        # Single-shot K: full-batch x resident (single-buffered), weight tiles pipelined.
        grid = (cout_p // bn,)
        vmem_need = (B * cin * itm          # x (1 buffer, resident)
                     + 2 * cin * bn * itm   # weight tiles (double-buffered)
                     + 2 * 2 * bn * 4       # gamma/beta slab
                     + 2 * B * bn * oitm    # output tiles
                     + 4 * B * bn * 4)      # f32 intermediates headroom
        out = pl.pallas_call(
            functools.partial(_s_block_kernel, batch=B),
            out_shape=jax.ShapeDtypeStruct((B, cout_p), out_dtype),
            grid_spec=pltpu.PrefetchScalarGridSpec(
                num_scalar_prefetch=0,
                grid=grid,
                in_specs=[
                    pl.BlockSpec((B, cin), lambda j: (0, 0),
                                 pipeline_mode=pl.Buffered(1)),   # resident: no 2nd buffer
                    pl.BlockSpec((cin, bn), lambda j: (0, j)),    # weight tile, pipelined
                    pl.BlockSpec((2, bn), lambda j: (0, j)),      # folded gamma/beta
                ],
                out_specs=pl.BlockSpec((B, bn), lambda j: (0, j)),
            ),
            compiler_params=pltpu.CompilerParams(
                dimension_semantics=("parallel",),
                vmem_limit_bytes=_vmem_limit(vmem_need)),
            cost_estimate=cost,
        )(x, wt, gb)
    else:
        # K-tiled: (Cout, K) grid, f32 accumulator, BN/tanh epilogue on the last K step.
        grid = (cout_p // bn, cin // tk)
        vmem_need = (2 * B * tk * itm
                     + 2 * tk * bn * itm
                     + 2 * 2 * bn * 4
                     + 2 * B * bn * oitm
                     + B * bn * 4            # accumulator
                     + 4 * B * bn * 4)
        out = pl.pallas_call(
            functools.partial(_s_block_kernel_ktiled, batch=B),
            out_shape=jax.ShapeDtypeStruct((B, cout_p), out_dtype),
            grid_spec=pltpu.PrefetchScalarGridSpec(
                num_scalar_prefetch=0,
                grid=grid,
                in_specs=[
                    pl.BlockSpec((B, tk), lambda j, k: (0, k)),
                    pl.BlockSpec((tk, bn), lambda j, k: (k, j)),
                    pl.BlockSpec((2, bn), lambda j, k: (0, j)),
                ],
                out_specs=pl.BlockSpec((B, bn), lambda j, k: (0, j)),
                scratch_shapes=[pltpu.VMEM((B, bn), jnp.float32)],
            ),
            compiler_params=pltpu.CompilerParams(
                dimension_semantics=("parallel", "arbitrary"),
                vmem_limit_bytes=_vmem_limit(vmem_need)),
            cost_estimate=cost,
        )(x, wt, gb)

    if cout != cout_p:
        out = out[:, :cout]
    return out


def s_block(x, w, gamma, beta, *, compute_dtype=None, block_n=None, k_block=None):
    """Convenience one-shot wrapper (prep + apply). For repeated calls, prepare once."""
    params = prepare_s_block_params(w, gamma, beta, compute_dtype=compute_dtype)
    return s_block_apply(x, params, block_n=block_n, k_block=k_block)


def s_block_ref(x, w, gamma, beta):
    y = x @ w.T
    mean = jnp.mean(y, axis=0, keepdims=True)
    var = jnp.mean((y - mean) ** 2, axis=0, keepdims=True)
    y = (y - mean) * jax.lax.rsqrt(var + BN_EPS) * gamma[None, :] + beta[None, :]
    return 1.0 + jnp.tanh(y)


def _make_inputs(key, batch, in_c):
    k_x, k_w, k_g, k_b = jax.random.split(key, 4)
    x = jax.random.normal(k_x, (batch, in_c), dtype=jnp.float32)
    # Linear weight in PyTorch (out, in) layout; BN gamma/beta.
    w = jax.random.normal(k_w, (in_c, in_c), dtype=jnp.float32) * (1.0 / jnp.sqrt(in_c))
    gamma = 1.0 + 0.1 * jax.random.normal(k_g, (in_c,), dtype=jnp.float32)
    beta = 0.1 * jax.random.normal(k_b, (in_c,), dtype=jnp.float32)
    return x, w, gamma, beta


if __name__ == "__main__":
    key = jax.random.PRNGKey(0)
    k1, k2, k3 = jax.random.split(key, 3)

    # --- Test 1: small module-spec shapes, f32 path (tight tolerance) -----------------
    B, in_c = 8, 32
    x, w, gamma, beta = _make_inputs(k1, B, in_c)
    params = prepare_s_block_params(w, gamma, beta)        # one-time init-style prep
    out = jax.block_until_ready(s_block_apply(x, params))
    ref = s_block_ref(x, w, gamma, beta)
    assert out.shape == (B, in_c)
    assert jnp.allclose(out, ref, atol=1e-4, rtol=1e-4), "f32 path mismatch vs reference"

    # --- Test 2: bf16 operands into the MXU, Cout grid of 2 "parallel" steps ----------
    B2, in_c2 = 16, 256
    x2, w2, g2, b2 = _make_inputs(k2, B2, in_c2)
    params_bf16 = prepare_s_block_params(w2, g2, b2, compute_dtype=jnp.bfloat16)
    out2 = jax.block_until_ready(s_block_apply(x2, params_bf16))
    ref2 = s_block_ref(x2, w2, g2, b2)
    assert out2.shape == (B2, in_c2)
    assert out2.dtype == x2.dtype
    assert jnp.allclose(out2, ref2, atol=1e-1), "bf16 path mismatch vs f32 reference"

    # --- Test 3: K-tiled path (accumulator + epilogue under pl.when), f32 -------------
    B3, in_c3 = 16, 256
    x3, w3, g3, b3 = _make_inputs(k3, B3, in_c3)
    params3 = prepare_s_block_params(w3, g3, b3)
    out3 = jax.block_until_ready(s_block_apply(x3, params3, k_block=128))
    ref3 = s_block_ref(x3, w3, g3, b3)
    assert out3.shape == (B3, in_c3)
    assert jnp.allclose(out3, ref3, atol=1e-4, rtol=1e-4), "K-tiled path mismatch"

    print("KERNEL_OK")
</pallas_src>

<mosaic_0001>
module attributes {stable_mosaic.version = 11 : i64} {
  func.func @_s_block_kernel(%arg0: i32, %arg1: memref<8x32xf32, #tpu.memory_space<vmem>>, %arg2: memref<32x128xf32, #tpu.memory_space<vmem>>, %arg3: memref<2x128xf32, #tpu.memory_space<vmem>>, %arg4: memref<8x128xf32, #tpu.memory_space<vmem>>) attributes {dimension_semantics = [#tpu.dimension_semantics<parallel>], iteration_bounds = array<i64: 1>, scalar_prefetch = 0 : i64, scratch_operands = 0 : i64, tpu.core_type = #tpu.core_type<tc>, window_params = [{pipeline_mode = #tpu.pipeline_mode<synchronous>, transform_indices = @transform_0, window_bounds = array<i64: 8, 32>}, {transform_indices = @transform_1, window_bounds = array<i64: 32, 128>}, {transform_indices = @transform_2, window_bounds = array<i64: 2, 128>}, {transform_indices = @transform_3, window_bounds = array<i64: 8, 128>}]} {
    %c0 = arith.constant 0 : index
    %c0_0 = arith.constant 0 : index
    %0 = vector.load %arg1[%c0, %c0_0] : memref<8x32xf32, #tpu.memory_space<vmem>>, vector<8x32xf32>
    %c0_1 = arith.constant 0 : index
    %c0_2 = arith.constant 0 : index
    %1 = vector.load %arg2[%c0_1, %c0_2] : memref<32x128xf32, #tpu.memory_space<vmem>>, vector<32x128xf32>
    %cst = arith.constant dense<0.000000e+00> : vector<8x128xf32>
    %2 = tpu.matmul %0, %1, %cst {dimension_numbers = #tpu.dot_dimension_numbers<[1], [0], [0], [1], [0, 0, 1, 1], [], []>} : vector<8x32xf32>, vector<32x128xf32>, vector<8x128xf32> -> vector<8x128xf32>
    %c0_3 = arith.constant 0 : index
    %c0_4 = arith.constant 0 : index
    %3 = vector.load %arg3[%c0_3, %c0_4] : memref<2x128xf32, #tpu.memory_space<vmem>>, vector<2x128xf32>
    %cst_5 = arith.constant dense<0.000000e+00> : vector<128xf32>
    %4 = vector.multi_reduction <add>, %2, %cst_5 [0] : vector<8x128xf32> to vector<128xf32>
    %5 = vector.shape_cast %4 : vector<128xf32> to vector<1x128xf32>
    %cst_6 = arith.constant 1.250000e-01 : f32
    %6 = vector.broadcast %cst_6 : f32 to vector<1x128xf32>
    %7 = arith.mulf %5, %6 : vector<1x128xf32>
    %8 = vector.broadcast %7 : vector<1x128xf32> to vector<8x128xf32>
    %9 = arith.subf %2, %8 : vector<8x128xf32>
    %10 = arith.mulf %9, %9 : vector<8x128xf32>
    %cst_7 = arith.constant dense<0.000000e+00> : vector<128xf32>
    %11 = vector.multi_reduction <add>, %10, %cst_7 [0] : vector<8x128xf32> to vector<128xf32>
    %12 = vector.shape_cast %11 : vector<128xf32> to vector<1x128xf32>
    %cst_8 = arith.constant 1.250000e-01 : f32
    %13 = vector.broadcast %cst_8 : f32 to vector<1x128xf32>
    %14 = arith.mulf %12, %13 : vector<1x128xf32>
    %15 = vector.extract_strided_slice %3 {offsets = [0, 0], sizes = [1, 128], strides = [1, 1]} : vector<2x128xf32> to vector<1x128xf32>
    %16 = vector.extract_strided_slice %3 {offsets = [1, 0], sizes = [1, 128], strides = [1, 1]} : vector<2x128xf32> to vector<1x128xf32>
    %cst_9 = arith.constant 9.99999974E-6 : f32
    %17 = vector.broadcast %cst_9 : f32 to vector<1x128xf32>
    %18 = arith.addf %14, %17 : vector<1x128xf32>
    %19 = math.rsqrt %18 : vector<1x128xf32>
    %20 = arith.mulf %19, %15 : vector<1x128xf32>
    %21 = vector.broadcast %20 : vector<1x128xf32> to vector<8x128xf32>
    %22 = arith.mulf %9, %21 : vector<8x128xf32>
    %23 = vector.broadcast %16 : vector<1x128xf32> to vector<8x128xf32>
    %24 = arith.addf %22, %23 : vector<8x128xf32>
    %25 = math.tanh %24 : vector<8x128xf32>
    %cst_10 = arith.constant 1.000000e+00 : f32
    %26 = vector.broadcast %cst_10 : f32 to vector<8x128xf32>
    %27 = arith.addf %26, %25 : vector<8x128xf32>
    %c0_11 = arith.constant 0 : index
    %c0_12 = arith.constant 0 : index
    %28 = vector.load %arg4[%c0_11, %c0_12] : memref<8x128xf32, #tpu.memory_space<vmem>>, vector<8x128xf32>
    tpu.vector_store %arg4[%c0_11, %c0_12], %27 {strides = array<i32>} : memref<8x128xf32, #tpu.memory_space<vmem>>, vector<8x128xf32>,
    return
  }
  func.func @transform_0(%arg0: i32) -> (i32, i32) {
    %c0_i32 = arith.constant 0 : i32
    %c0_i32_0 = arith.constant 0 : i32
    %c0_i32_1 = arith.constant 0 : i32
    return %c0_i32, %c0_i32_0 : i32, i32
  }
  func.func @transform_1(%arg0: i32) -> (i32, i32) {
    %c0_i32 = arith.constant 0 : i32
    %c0_i32_0 = arith.constant 0 : i32
    return %c0_i32, %arg0 : i32, i32
  }
  func.func @transform_2(%arg0: i32) -> (i32, i32) {
    %c0_i32 = arith.constant 0 : i32
    %c0_i32_0 = arith.constant 0 : i32
    return %c0_i32, %arg0 : i32, i32
  }
  func.func @transform_3(%arg0: i32) -> (i32, i32) {
    %c0_i32 = arith.constant 0 : i32
    %c0_i32_0 = arith.constant 0 : i32
    return %c0_i32, %arg0 : i32, i32
  }
}

</mosaic_0001>

<llo_original>
// kernel: tpu_custom_call.1
$region0: #{tpu_custom_call.1}
  #allocation0 [shape = 'u32[]', space=smem, size = 0x4, offset = 0x4, fixed_abs, tag = 'smem constant byte address 0x4 - core index']
  #allocation1 [shape = 'u32[144,128]{1,0:T(1,128)}', space=vmem, size = 0x12000, scoped, tag = 'internal scratch']
  %s0 = inlined_call_operand.hbm [shape: f32[8,32], index: 0, kind: input, shape index: {}]
  %s1 = inlined_call_operand.hbm [shape: f32[32,128], index: 1, kind: input, shape index: {}]
  %s2 = inlined_call_operand.vmem [shape: f32[2,128], index: 2, kind: input, shape index: {}]
  %s3 = inlined_call_operand.hbm [shape: f32[8,128], index: 3, kind: output, shape index: {}]
  %s4 = sld [smem:[#allocation0]]
  $region30: #{tpu_custom_call.1} parent=0
    _
  %s6 = ssub.s32 1, %s4
  %s7 = scalar_select 0, %s6, %s4
  $region1: #{tpu_custom_call.1} parent=0
    #allocation2 [shape = 'u8[4096]{0}', space=vmem, size = 0x1000, scoped, tag = 'input window, operand 0, single buffered']
    #allocation3 [shape = 's32[1]{0}', space=sflag, size = 0x4, scoped, tag = 'scoped memory for tpu_custom_call.1']
    #allocation4 [shape = 's32[1]{0}', space=sflag, size = 0x4, scoped, tag = 'scoped memory for tpu_custom_call.1']
    #allocation5 [shape = 'u8[16384]{0}', space=vmem, size = 0x4000, scoped, tag = 'input window, operand 1, single buffered']
    #allocation6 [shape = 's32[1]{0}', space=sflag, size = 0x4, scoped, tag = 'scoped memory for tpu_custom_call.1']
    #allocation7 [shape = 'u8[4096]{0}', space=vmem, size = 0x1000, scoped, tag = 'output window, operand 0, single buffered']
    %8 = vsyncpa [#allocation3], 0
    %9 = vsyncpa [#allocation6], 0
    %10 = vsyncpa [#allocation4], 0
    // Predicated region
    $region2: #{tpu_custom_call.1} parent=1 // pred_check
      _
    $region3: #{tpu_custom_call.1} parent=1 // pred_check_branch
      %12 = sbr.rel (0) target = $region5
    $region4: #{tpu_custom_call.1} parent=1 // pred_region
      %s14 = ssub.s32 128, 128
      %15 = vsyncadd [#allocation3], %s14
      %s17 = sshll.u32 [#allocation2], 4
      %s18 = int_to_ptr.vmem [resolvable:$true] %s17
      %20 = dma.hbm_to_vmem [thread:$0]  %s0, 128, %s18, [#allocation3]
    $region5: #{tpu_custom_call.1} parent=1 // pred_fallthru
      _
    // Predicated region
    $region6: #{tpu_custom_call.1} parent=1 // pred_check
      _
    $region7: #{tpu_custom_call.1} parent=1 // pred_check_branch
      %22 = sbr.rel (0) target = $region9
    $region8: #{tpu_custom_call.1} parent=1 // pred_region
      %s24 = ssub.s32 512, 512
      %25 = vsyncadd [#allocation6], %s24
      %s26 = sshll.u32 [#allocation5], 4
      %s27 = int_to_ptr.vmem [resolvable:$true] %s26
      %32 = dma.hbm_to_vmem [thread:$0]  %s1, 512, %s27, [#allocation6], 128, 128, 8
    $region9: #{tpu_custom_call.1} parent=1 // pred_fallthru
      _
    // Predicated region
    $region10: #{tpu_custom_call.1} parent=1 // pred_check
      _
    $region11: #{tpu_custom_call.1} parent=1 // pred_check_branch
      %34 = sbr.rel (0) target = $region13
    $region12: #{tpu_custom_call.1} parent=1 // pred_region
      _
    $region13: #{tpu_custom_call.1} parent=1 // pred_fallthru
      _
    // Predicated region
    $region14: #{tpu_custom_call.1} parent=1 // pred_check
      _
    $region15: #{tpu_custom_call.1} parent=1 // pred_check_branch
      %36 = sbr.rel (0) target = $region17
    $region16: #{tpu_custom_call.1} parent=1 // pred_region
      %37 = dma.done [#allocation3], 128
    $region17: #{tpu_custom_call.1} parent=1 // pred_fallthru
      _
    // Predicated region
    $region18: #{tpu_custom_call.1} parent=1 // pred_check
      _
    $region19: #{tpu_custom_call.1} parent=1 // pred_check_branch
      %39 = sbr.rel (0) target = $region21
    $region20: #{tpu_custom_call.1} parent=1 // pred_region
      %40 = dma.done [#allocation6], 512
    $region21: #{tpu_custom_call.1} parent=1 // pred_fallthru
      _
    %v41 = vld [vmem:[#allocation2] sm:$0xff]
    %v42 = vld [vmem:[#allocation5] sm:$0xff]
    %v43 = vld [vmem:[#allocation5 + $0x8] sm:$0xff]
    %v44 = vld [vmem:[#allocation5 + $0x10] sm:$0xff]
    %v45 = vld [vmem:[#allocation5 + $0x18] sm:$0xff]
    %vm46 = vcmask 261120
    %v48 = vsel %vm46, %v41, 0
    %50 = vmatprep.subr.mxu0 0.0
    %51 = vmatpush1.msra.mxu0 %v42
    %52 = vmatprep.subr.mxu0 0.0
    %53 = vmatpush1.msra.mxu0 %v43
    %54 = vmatprep.subr.mxu0 0.0
    %55 = vmatpush1.msra.mxu0 %v44
    %56 = vmatprep.subr.mxu0 0.0
    %57 = vmatpush1.msra.mxu0 %v45
    %58 = vmatprep.subr.mxu0 0.0
    %59 = vmatpush1.msra.mxu0 0.0
    %60 = vmatprep.subr.mxu0 0.0
    %61 = vmatpush1.msra.mxu0 0.0
    %62 = vmatprep.subr.mxu0 0.0
    %63 = vmatpush1.msra.mxu0 0.0
    %64 = vmatprep.subr.mxu0 0.0
    %65 = vmatpush1.msra.mxu0 0.0
    %66 = vmatprep.subr.mxu0 0.0
    %67 = vmatpush1.msra.mxu0 0.0
    %68 = vmatprep.subr.mxu0 0.0
    %69 = vmatpush1.msra.mxu0 0.0
    %70 = vmatprep.subr.mxu0 0.0
    %71 = vmatpush1.msra.mxu0 0.0
    %72 = vmatprep.subr.mxu0 0.0
    %73 = vmatpush1.msra.mxu0 0.0
    %74 = vmatprep.subr.mxu0 0.0
    %75 = vmatpush1.msra.mxu0 0.0
    %76 = vmatprep.subr.mxu0 0.0
    %77 = vmatpush1.msra.mxu0 0.0
    %78 = vmatprep.subr.mxu0 0.0
    %79 = vmatpush1.msra.mxu0 0.0
    %80 = vmatprep.subr.mxu0 0.0
    %81 = vmatpush1.msra.mxu0 0.0
    %82 = vmatprep.subr.mxu0 0.0
    %83 = vmatpush1.msra.mxu0 0.0
    %84 = vmatprep.subr.mxu0 0.0
    %85 = vmatpush1.msra.mxu0 0.0
    %86 = vmatprep.subr.mxu0 0.0
    %87 = vmatpush1.msra.mxu0 0.0
    %88 = vmatprep.subr.mxu0 0.0
    %89 = vmatpush1.msra.mxu0 0.0
    %90 = vmatprep.subr.mxu0 0.0
    %91 = vmatpush1.msra.mxu0 0.0
    %92 = vmatprep.subr.mxu0 0.0
    %93 = vmatpush1.msra.mxu0 0.0
    %94 = vmatprep.subr.mxu0 0.0
    %95 = vmatpush1.msra.mxu0 0.0
    %96 = vmatprep.subr.mxu0 0.0
    %97 = vmatpush1.msra.mxu0 0.0
    %98 = vmatprep.subr.mxu0 0.0
    %99 = vmatpush1.msra.mxu0 0.0
    %100 = vmatprep.subr.mxu0 0.0
    %101 = vmatpush1.msra.mxu0 0.0
    %102 = vmatprep.subr.mxu0 0.0
    %103 = vmatpush1.msra.mxu0 0.0
    %104 = vmatprep.subr.mxu0 0.0
    %105 = vmatpush1.msra.mxu0 0.0
    %106 = vmatprep.subr.mxu0 0.0
    %107 = vmatpush1.msra.mxu0 0.0
    %108 = vmatprep.subr.mxu0 0.0
    %109 = vmatpush1.msra.mxu0 0.0
    %110 = vmatprep.subr.mxu0 0.0
    %111 = vmatpush1.msra.mxu0 0.0
    %112 = vmatprep.subr.mxu0 0.0
    %113 = vmatpush1.msra.mxu0 0.0
    %114 = vmatprep.mubr.f32.mxu0 0.0
    %115 = vmatmul.mubr.f32.gmra.mrb[0].mxu0 %v48
    %v116 = vpop.f32.mrb[0].mxu0
    %v117 = vadd.f32 0.0, %v116
    %v118 = vpop.f32.mrb[0].mxu0
    %119 = vdwg.mxu0
    %v120 = vld [vmem:[%s2] sm:$0x3]
    %v121 = vrot.slane %v117, 4
    %v122 = vadd.f32 %v117, %v121
    %v123 = vrot.slane %v122, 2
    %v124 = vadd.f32 %v122, %v123
    %v125 = vrot.slane %v124, 1
    %v126 = vadd.f32 %v124, %v125
    %v127 = vmul.f32 %v126, 0.125
    %v128 = vsub.f32 %v117, %v127
    %v129 = vmul.f32 %v128, %v128
    %v130 = vrot.slane %v129, 4
    %v131 = vadd.f32 %v129, %v130
    %v132 = vrot.slane %v131, 2
    %v133 = vadd.f32 %v131, %v132
    %v134 = vrot.slane %v133, 1
    %v135 = vadd.f32 %v133, %v134
    %v136 = vmul.f32 %v135, 0.125
    %v137 = vadd.f32 %v136, 1e-05
    %v138 = vrsqrt.pop %v137
    %v139 = vmul.f32 %v138, %v120
    %v140 = vlaneseq
    %v141 = vshrl.u32 %v140, 7
    %v142 = vsub.s32 0, %v141
    %v143 = vrot.slane %v139, %v142
    %v144 = vmul.f32 %v128, %v143
    %v145 = vlaneseq
    %v146 = vshrl.u32 %v145, 7
    %v147 = vsub.s32 1, %v146
    %v148 = vrot.slane %v120, %v147
    %v149 = vadd.f32 %v144, %v148
    %v150 = vtanh.pop %v149
    %v151 = vadd.f32 %v150, 1.0
    %152 = vst [vmem:[#allocation7] sm:$0xff] %v151
    // Predicated region
    $region22: #{tpu_custom_call.1} parent=1 // pred_check
      _
    $region23: #{tpu_custom_call.1} parent=1 // pred_check_branch
      %154 = sbr.rel (0) target = $region25
    $region24: #{tpu_custom_call.1} parent=1 // pred_region
      %s156 = ssub.s32 128, 128
      %157 = vsyncadd [#allocation4], %s156
      %s159 = sshll.u32 [#allocation7], 4
      %s160 = int_to_ptr.vmem [resolvable:$true] %s159
      %162 = dma.vmem_to_hbm [thread:$0]  %s160, 128, %s3, [#allocation4]
    $region25: #{tpu_custom_call.1} parent=1 // pred_fallthru
      _
    // Predicated region
    $region26: #{tpu_custom_call.1} parent=1 // pred_check
      _
    $region27: #{tpu_custom_call.1} parent=1 // pred_check_branch
      %164 = sbr.rel (0) target = $region29
    $region28: #{tpu_custom_call.1} parent=1 // pred_region
      %165 = dma.done [#allocation4], 128
    $region29: #{tpu_custom_call.1} parent=1 // pred_fallthru
      _
    %166 = vsyncpa [#allocation3], 1
    %167 = vsyncpa [#allocation6], 1
    %168 = vsyncpa [#allocation4], 1

</llo_original>
